<compile_context>
chip_gen: v7x
topology: tpu7x:2x2x1
jax: 0.10.0
libtpu: 0.0.40
codegen_flags: <defaults>
</compile_context>

<pallas_src>
import jax
import jax.numpy as jnp
from jax.experimental import pallas as pl
from jax.experimental.pallas import tpu as pltpu

_LANES = 128
_MIN_CAP_BLOCK_BYTES = 2 << 20   # never shrink a block below the HBM-roofline knee
_VMEM_HEADROOM = 4 << 20


def _tanh_kernel(x_ref, o_ref):
    # Whole-tile elementwise tanh (EUP transcendental; VPU/DMA slots stay free).
    o_ref[...] = jnp.tanh(x_ref[...])


def _round_up(a: int, m: int) -> int:
    return ((a + m - 1) // m) * m


def _tpu_generation() -> int:
    """Best-effort TPU generation number (5 / 6 / 7); 0 if unknown."""
    try:
        kind = jax.devices()[0].device_kind.lower()
    except Exception:
        return 0
    for gen in (7, 6, 5, 4):
        if f"v{gen}" in kind or f"tpu{gen}" in kind:
            return gen
    return 0


def _compiler_params(block_bytes: int) -> pltpu.CompilerParams:
    # 2 input + 2 output double buffers, plus slack.
    vmem_limit = 4 * block_bytes + _VMEM_HEADROOM
    return pltpu.CompilerParams(
        # TODO(synk): on v7x, evaluate pltpu.CORE_PARALLEL on this axis if plain
        # "parallel" does not actually shard the grid across both TensorCores.
        dimension_semantics=("parallel",),
        vmem_limit_bytes=vmem_limit,
    )


def _cost(n_elems: int, itemsize: int) -> pl.CostEstimate:
    # Bandwidth-bound picture for XLA's scheduler: 0 flops, n transcendentals,
    # one read + one write per element.
    return pl.CostEstimate(flops=0, transcendentals=n_elems,
                           bytes_accessed=2 * n_elems * itemsize)


def _tanh_rows(x2d, *, target_block_bytes: int, min_grid_steps: int):
    """Pallas tanh over a lane-dense (rows, 128) slab (lane-aligned sizes)."""
    rows, lanes = x2d.shape
    itemsize = jnp.dtype(x2d.dtype).itemsize
    # Packed-sublane alignment: f32 -> 8, bf16 -> 16, fp8 -> 32.
    sub_align = max(8, 32 // max(itemsize, 1))
    row_bytes = lanes * itemsize

    # Largest multiple-of-sub_align row count that fits the byte target.
    br = max(sub_align, (target_block_bytes // row_bytes) // sub_align * sub_align)
    # Never request (much) more rows than the array has.
    br = min(br, _round_up(rows, sub_align))
    # Multi-TensorCore sharding floor (v7x only): keep >= min_grid_steps grid
    # steps, but only if the capped block stays above the roofline knee.
    if min_grid_steps > 1:
        capped = _round_up(pl.cdiv(rows, min_grid_steps), sub_align)
        if capped * row_bytes >= _MIN_CAP_BLOCK_BYTES:
            br = min(br, capped)

    grid = (pl.cdiv(rows, br),)  # partial edge block (if any) is masked by Pallas
    return pl.pallas_call(
        _tanh_kernel,
        out_shape=jax.ShapeDtypeStruct((rows, lanes), x2d.dtype),
        grid=grid,
        in_specs=[pl.BlockSpec((br, lanes), lambda i: (i, 0))],
        out_specs=pl.BlockSpec((br, lanes), lambda i: (i, 0)),
        compiler_params=_compiler_params(br * row_bytes),
        cost_estimate=_cost(rows * lanes, itemsize),
    )(x2d)


def _tanh_flat(flat, *, target_block_bytes: int, min_grid_steps: int):
    """Pallas tanh over a flat 1-D array; the ragged tail is a masked edge block."""
    (n,) = flat.shape
    itemsize = jnp.dtype(flat.dtype).itemsize
    # Whole (sublane x lane) tiles per block: 1024 elems for f32, 2048 for bf16.
    align = max(8, 32 // max(itemsize, 1)) * _LANES
    # Modest blocks (<= 512 KiB): still ~85% of HBM roofline and VMEM-robust;
    # this path only runs for sizes that are not a multiple of 128.
    tgt = min(target_block_bytes, 512 << 10)
    be = max(align, (tgt // itemsize) // align * align)
    be = min(be, _round_up(n, align))
    if min_grid_steps > 1:
        capped = _round_up(pl.cdiv(n, min_grid_steps), align)
        if capped * itemsize >= _MIN_CAP_BLOCK_BYTES:
            be = min(be, capped)

    grid = (pl.cdiv(n, be),)  # last block is partially masked, no pad/concat pass
    return pl.pallas_call(
        _tanh_kernel,
        out_shape=jax.ShapeDtypeStruct((n,), flat.dtype),
        grid=grid,
        in_specs=[pl.BlockSpec((be,), lambda i: (i,))],
        out_specs=pl.BlockSpec((be,), lambda i: (i,)),
        compiler_params=_compiler_params(be * itemsize),
        cost_estimate=_cost(n, itemsize),
    )(flat)


def tanh_pallas(x, *, target_block_bytes=None, min_grid_steps=None,
                min_pallas_bytes: int = 256 << 10):
    """Elementwise tanh via a Pallas TPU kernel. Preserves shape and dtype."""
    if not jnp.issubdtype(x.dtype, jnp.floating):
        # Match torch.tanh's promotion of non-float inputs; defer to XLA.
        return jnp.tanh(x)

    n = x.size
    if n == 0:
        return x
    itemsize = jnp.dtype(x.dtype).itemsize
    if n * itemsize < min_pallas_bytes:
        # Tiny tensors: launch/step overhead dominates and the custom call
        # would block XLA elementwise fusion -> plain tanh is faster.
        return jnp.tanh(x)

    gen = _tpu_generation()
    if target_block_bytes is None:
        # v7x: bigger blocks vs its ~3.2 TB/s HBM; v6e: 4 MiB fits the 32 MiB
        # scoped default; v5e / unknown: 2 MiB is already near roofline.
        target_block_bytes = {7: 8 << 20, 6: 4 << 20}.get(gen, 2 << 20)
    if min_grid_steps is None:
        # Only v7x has 2 TensorCores worth sharding the 1-D grid across.
        min_grid_steps = 8 if gen >= 7 else 1

    orig_shape = x.shape
    flat = x.reshape(-1)
    if n % _LANES == 0:
        out = _tanh_rows(flat.reshape(n // _LANES, _LANES),
                         target_block_bytes=target_block_bytes,
                         min_grid_steps=min_grid_steps)
    else:
        out = _tanh_flat(flat,
                         target_block_bytes=target_block_bytes,
                         min_grid_steps=min_grid_steps)
    return out.reshape(orig_shape)


if __name__ == "__main__":
    key = jax.random.PRNGKey(0)
    k1, k2 = jax.random.split(key)

    # Small NCHW input consistent with typical module usage (2048 elems, lane-aligned).
    x = jax.random.normal(k1, (2, 4, 16, 16), dtype=jnp.float32)
    y_ref = jnp.tanh(x)

    # Force the Pallas path (the default wrapper falls back to XLA below 256 KiB).
    y = jax.block_until_ready(tanh_pallas(x, min_pallas_bytes=0))
    assert y.shape == x.shape and y.dtype == x.dtype
    assert jnp.allclose(y, y_ref, atol=1e-6, rtol=1e-6), "mismatch vs jnp.tanh (aligned path)"

    # Unaligned total size (40*100 = 4000, not a multiple of 128): single-pass
    # masked-edge 1-D path, small blocks to exercise multiple grid steps.
    x_ragged = jax.random.normal(k2, (40, 100), dtype=jnp.float32)
    y_ragged = jax.block_until_ready(
        tanh_pallas(x_ragged, min_pallas_bytes=0, target_block_bytes=4096))
    assert y_ragged.shape == x_ragged.shape and y_ragged.dtype == x_ragged.dtype
    assert jnp.allclose(y_ragged, jnp.tanh(x_ragged), atol=1e-6, rtol=1e-6), \
        "mismatch vs jnp.tanh (ragged path)"

    # Default wrapper semantics on the small module-sized input (XLA fallback).
    y_default = jax.block_until_ready(tanh_pallas(x))
    assert jnp.allclose(y_default, y_ref, atol=1e-6, rtol=1e-6)

    print("KERNEL_OK")
</pallas_src>

<mosaic_0001>
module attributes {stable_mosaic.version = 11 : i64} {
  func.func @_tanh_kernel(%arg0: i32, %arg1: memref<16x128xf32, #tpu.memory_space<vmem>>, %arg2: memref<16x128xf32, #tpu.memory_space<vmem>>) attributes {dimension_semantics = [#tpu.dimension_semantics<parallel>], iteration_bounds = array<i64: 1>, scalar_prefetch = 0 : i64, scratch_operands = 0 : i64, tpu.core_type = #tpu.core_type<tc>, window_params = [{transform_indices = @transform_0, window_bounds = array<i64: 16, 128>}, {transform_indices = @transform_1, window_bounds = array<i64: 16, 128>}]} {
    %c0 = arith.constant 0 : index
    %c0_0 = arith.constant 0 : index
    %0 = vector.load %arg1[%c0, %c0_0] : memref<16x128xf32, #tpu.memory_space<vmem>>, vector<16x128xf32>
    %1 = math.tanh %0 : vector<16x128xf32>
    %c0_1 = arith.constant 0 : index
    %c0_2 = arith.constant 0 : index
    %2 = vector.load %arg2[%c0_1, %c0_2] : memref<16x128xf32, #tpu.memory_space<vmem>>, vector<16x128xf32>
    tpu.vector_store %arg2[%c0_1, %c0_2], %1 {strides = array<i32>} : memref<16x128xf32, #tpu.memory_space<vmem>>, vector<16x128xf32>,
    return
  }
  func.func @transform_0(%arg0: i32) -> (i32, i32) {
    %c0_i32 = arith.constant 0 : i32
    %c0_i32_0 = arith.constant 0 : i32
    return %arg0, %c0_i32 : i32, i32
  }
  func.func @transform_1(%arg0: i32) -> (i32, i32) {
    %c0_i32 = arith.constant 0 : i32
    %c0_i32_0 = arith.constant 0 : i32
    return %arg0, %c0_i32 : i32, i32
  }
}

</mosaic_0001>

<llo_original>
// kernel: tpu_custom_call.1
$region0: #{tpu_custom_call.1}
  #allocation0 [shape = 'u32[]', space=smem, size = 0x4, offset = 0x4, fixed_abs, tag = 'smem constant byte address 0x4 - core index']
  #allocation1 [shape = 'u32[144,128]{1,0:T(1,128)}', space=vmem, size = 0x12000, scoped, tag = 'internal scratch']
  %s0 = inlined_call_operand.hbm [shape: f32[16,128], index: 0, kind: input, shape index: {}]
  %s1 = inlined_call_operand.hbm [shape: f32[16,128], index: 1, kind: output, shape index: {}]
  %s2 = sld [smem:[#allocation0]]
  $region18: #{tpu_custom_call.1} parent=0
    _
  %s4 = ssub.s32 1, %s2
  %s5 = scalar_select 0, %s4, %s2
  $region1: #{tpu_custom_call.1} parent=0
    #allocation2 [shape = 'u8[8192]{0}', space=vmem, size = 0x2000, scoped, tag = 'input window, operand 0, single buffered']
    #allocation3 [shape = 's32[1]{0}', space=sflag, size = 0x4, scoped, tag = 'scoped memory for tpu_custom_call.1']
    #allocation4 [shape = 's32[1]{0}', space=sflag, size = 0x4, scoped, tag = 'scoped memory for tpu_custom_call.1']
    #allocation5 [shape = 'u8[8192]{0}', space=vmem, size = 0x2000, scoped, tag = 'output window, operand 0, single buffered']
    %6 = vsyncpa [#allocation3], 0
    %7 = vsyncpa [#allocation4], 0
    // Predicated region
    $region2: #{tpu_custom_call.1} parent=1 // pred_check
      _
    $region3: #{tpu_custom_call.1} parent=1 // pred_check_branch
      %9 = sbr.rel (0) target = $region5
    $region4: #{tpu_custom_call.1} parent=1 // pred_region
      %s11 = ssub.s32 256, 256
      %12 = vsyncadd [#allocation3], %s11
      %s13 = sshll.u32 [#allocation2], 4
      %s14 = int_to_ptr.vmem [resolvable:$true] %s13
      %19 = dma.hbm_to_vmem [thread:$0]  %s0, 256, %s14, [#allocation3], 128, 128, 8
    $region5: #{tpu_custom_call.1} parent=1 // pred_fallthru
      _
    // Predicated region
    $region6: #{tpu_custom_call.1} parent=1 // pred_check
      _
    $region7: #{tpu_custom_call.1} parent=1 // pred_check_branch
      %21 = sbr.rel (0) target = $region9
    $region8: #{tpu_custom_call.1} parent=1 // pred_region
      %22 = dma.done [#allocation3], 256
    $region9: #{tpu_custom_call.1} parent=1 // pred_fallthru
      _
    %v23 = vld [vmem:[#allocation2] sm:$0xff]
    %v24 = vld [vmem:[#allocation2 + $0x8] sm:$0xff]
    %v25 = vtanh.pop %v23
    %v26 = vtanh.pop %v24
    %27 = vst [vmem:[#allocation5] sm:$0xff] %v25
    %28 = vst [vmem:[#allocation5 + $0x8] sm:$0xff] %v26
    // Predicated region
    $region10: #{tpu_custom_call.1} parent=1 // pred_check
      _
    $region11: #{tpu_custom_call.1} parent=1 // pred_check_branch
      %30 = sbr.rel (0) target = $region13
    $region12: #{tpu_custom_call.1} parent=1 // pred_region
      %s32 = ssub.s32 256, 256
      %33 = vsyncadd [#allocation4], %s32
      %s34 = sshll.u32 [#allocation5], 4
      %s35 = int_to_ptr.vmem [resolvable:$true] %s34
      %40 = dma.vmem_to_hbm [thread:$0]  %s35, 256, %s1, [#allocation4], 128, 128, 8
    $region13: #{tpu_custom_call.1} parent=1 // pred_fallthru
      _
    // Predicated region
    $region14: #{tpu_custom_call.1} parent=1 // pred_check
      _
    $region15: #{tpu_custom_call.1} parent=1 // pred_check_branch
      %42 = sbr.rel (0) target = $region17
    $region16: #{tpu_custom_call.1} parent=1 // pred_region
      %43 = dma.done [#allocation4], 256
    $region17: #{tpu_custom_call.1} parent=1 // pred_fallthru
      _
    %44 = vsyncpa [#allocation3], 1
    %45 = vsyncpa [#allocation4], 1

</llo_original>
